<compile_context>
chip_gen: v6e
topology: v6e:2x2x1
jax: 0.10.0
libtpu: 0.0.40
codegen_flags: <defaults>
</compile_context>

<pallas_src>
import functools

import jax
import jax.numpy as jnp
from jax.experimental import pallas as pl
from jax.experimental.pallas import tpu as pltpu

NO_MFCC = 32          # input_size (noMfcc)
HIDDEN = 100
OUTPUT_SIZE = 211
BN_EPS = 1e-5

HIDDEN_PAD = 128      # 100 -> 128 (lane-aligned for both matmuls)
TB_MAX = 2048         # max batch-tile rows per grid step (multiple of 512)


def _round_up(x, m):
    return (x + m - 1) // m * m


def _pick_tile(B):
    """Batch tile: large for HBM efficiency, but >= 2 tiles when possible
    so v7x's two TensorCores both get work; 16-row aligned."""
    half = pl.cdiv(B, 2)
    return min(TB_MAX, _round_up(max(half, 1), 16))


# ----------------------------------------------------------------------------
# Kernel: one batch tile.  Weights are resident (constant index_map).
# ----------------------------------------------------------------------------
def _mlp_kernel(x_ref, w1_ref, b1_ref, w6_ref, b6_ref, o_ref):
    # x: (tb, 32) f32, w1: (32, 128) bf16, b1: (1, 128) f32
    # w6: (128, 211) bf16, b6: (1, 211) f32, o: (tb, 211) f32
    x = x_ref[...].astype(jnp.bfloat16)                       # cast in-kernel
    h = jnp.dot(x, w1_ref[...],
                preferred_element_type=jnp.float32)           # MXU, f32 acc
    h = jnp.tanh(h + b1_ref[...])                             # f32 VPU/EUP
    # Dropout(p=0.25) is identity in eval mode -> nothing to do.
    out = jnp.dot(h.astype(jnp.bfloat16), w6_ref[...],
                  preferred_element_type=jnp.float32)         # MXU, f32 acc
    o_ref[...] = out + b6_ref[...]


# ----------------------------------------------------------------------------
# One-time parameter preparation: fold BN + bias, pad hidden dim, cast.
# ----------------------------------------------------------------------------
def prepare_params(params):
    w1, b1 = params["w1"], params["b1"]                        # (32,100), (100,)
    gamma, beta = params["gamma"], params["beta"]
    run_mean, run_var = params["run_mean"], params["run_var"]
    w6, b6 = params["w6"], params["b6"]                        # (100,211), (211,)

    # Fold BatchNorm1d (inference) + linear1 bias into the weights (exact).
    scale = gamma / jnp.sqrt(run_var + BN_EPS)                 # (100,)
    shift = beta - run_mean * scale                            # (100,)
    w1f = w1 * scale[None, :]                                  # (32, 100)
    b1f = b1 * scale + shift                                   # (100,)

    # Zero-pad the hidden dim to 128 (exact: padded hidden columns produce
    # tanh(0)=0 and multiply zero rows of w6).
    w1p = jnp.zeros((NO_MFCC, HIDDEN_PAD), jnp.float32).at[:, :HIDDEN].set(w1f)
    b1p = jnp.zeros((1, HIDDEN_PAD), jnp.float32).at[0, :HIDDEN].set(b1f)
    w6p = jnp.zeros((HIDDEN_PAD, OUTPUT_SIZE),
                    jnp.float32).at[:HIDDEN, :].set(w6)
    b6p = b6.reshape(1, OUTPUT_SIZE).astype(jnp.float32)

    return {
        "w1": w1p.astype(jnp.bfloat16),
        "b1": b1p,                        # f32 (added post-MXU)
        "w6": w6p.astype(jnp.bfloat16),
        "b6": b6p,                        # f32
    }


# ----------------------------------------------------------------------------
# Forward wrapper: single pallas_call over a batch grid, no pad / slice pass.
# ----------------------------------------------------------------------------
@functools.partial(jax.jit, static_argnames=())
def network_forward(x, prepped):
    """x: (B, NO_MFCC) float32.  Returns (B, OUTPUT_SIZE) float32."""
    B = x.shape[0]
    tb = _pick_tile(B)
    grid = (pl.cdiv(B, tb),)

    out = pl.pallas_call(
        _mlp_kernel,
        out_shape=jax.ShapeDtypeStruct((B, OUTPUT_SIZE), jnp.float32),
        grid=grid,
        in_specs=[
            pl.BlockSpec((tb, NO_MFCC), lambda i: (i, 0)),             # x tile
            pl.BlockSpec((NO_MFCC, HIDDEN_PAD), lambda i: (0, 0)),     # w1 (resident)
            pl.BlockSpec((1, HIDDEN_PAD), lambda i: (0, 0)),           # b1
            pl.BlockSpec((HIDDEN_PAD, OUTPUT_SIZE), lambda i: (0, 0)), # w6 (resident)
            pl.BlockSpec((1, OUTPUT_SIZE), lambda i: (0, 0)),          # b6
        ],
        out_specs=pl.BlockSpec((tb, OUTPUT_SIZE), lambda i: (i, 0)),
        compiler_params=pltpu.CompilerParams(
            dimension_semantics=("parallel",)),                        # 2 TCs on v7x
    )(x, prepped["w1"], prepped["b1"], prepped["w6"], prepped["b6"])

    return out


# ----------------------------------------------------------------------------
# Parameter init (shapes/dtypes match the PyTorch module).
# ----------------------------------------------------------------------------
def init_params(key):
    k1, k2, k3, k4, k5, k6 = jax.random.split(key, 6)
    lim1 = 1.0 / jnp.sqrt(jnp.float32(NO_MFCC))
    lim6 = 1.0 / jnp.sqrt(jnp.float32(HIDDEN))
    return {
        # Stored transposed relative to PyTorch (out,in) -> (in,out).
        "w1": jax.random.uniform(k1, (NO_MFCC, HIDDEN), jnp.float32,
                                 -lim1, lim1),
        "b1": jax.random.uniform(k2, (HIDDEN,), jnp.float32, -lim1, lim1),
        "gamma": jnp.ones((HIDDEN,), jnp.float32)
                 + 0.1 * jax.random.normal(k3, (HIDDEN,), jnp.float32),
        "beta": 0.1 * jax.random.normal(k4, (HIDDEN,), jnp.float32),
        "run_mean": jnp.zeros((HIDDEN,), jnp.float32),
        "run_var": jnp.ones((HIDDEN,), jnp.float32),
        "w6": jax.random.uniform(k5, (HIDDEN, OUTPUT_SIZE), jnp.float32,
                                 -lim6, lim6),
        "b6": jax.random.uniform(k6, (OUTPUT_SIZE,), jnp.float32,
                                 -lim6, lim6),
    }


# ----------------------------------------------------------------------------
# References for correctness checking.
# ----------------------------------------------------------------------------
def reference_forward_f32(x, params):
    """Pure f32 reference matching the PyTorch module semantics (eval mode)."""
    scale = params["gamma"] / jnp.sqrt(params["run_var"] + BN_EPS)
    shift = params["beta"] - params["run_mean"] * scale
    h = x @ params["w1"] + params["b1"]
    h = jnp.tanh(h * scale + shift)
    return h @ params["w6"] + params["b6"]


def reference_forward_bf16(x, prepped):
    """Pure-JAX reference with identical bf16/f32 numerics as the kernel."""
    xb = x.astype(jnp.bfloat16)
    h = jnp.dot(xb, prepped["w1"], preferred_element_type=jnp.float32)
    h = jnp.tanh(h + prepped["b1"])
    out = jnp.dot(h.astype(jnp.bfloat16), prepped["w6"],
                  preferred_element_type=jnp.float32) + prepped["b6"]
    return out


if __name__ == "__main__":
    key = jax.random.PRNGKey(0)
    k_x, k_p = jax.random.split(key)

    # Small batch chosen so the grid has 2 tiles (exercises the parallel grid
    # and the ragged last block): tb = 16, grid = (2,).
    B = 24
    x = jax.random.normal(k_x, (B, NO_MFCC), jnp.float32)
    params = init_params(k_p)
    prepped = prepare_params(params)

    out = network_forward(x, prepped)
    out = jax.block_until_ready(out)
    assert out.shape == (B, OUTPUT_SIZE), out.shape

    # Tight check vs. a pure-JAX reference with identical bf16/f32 numerics.
    ref_bf16 = reference_forward_bf16(x, prepped)
    assert jnp.allclose(out, ref_bf16, atol=2e-3, rtol=2e-3), (
        float(jnp.max(jnp.abs(out - ref_bf16))))

    # Looser semantic check vs. the full-f32 PyTorch-equivalent reference
    # (difference is only the bf16 weight/activation quantization).
    ref_f32 = reference_forward_f32(x, params)
    assert float(jnp.max(jnp.abs(out - ref_f32))) < 5e-2, (
        float(jnp.max(jnp.abs(out - ref_f32))))

    print("KERNEL_OK")
</pallas_src>

<mosaic_0001>
module attributes {stable_mosaic.version = 11 : i64} {
  func.func @_mlp_kernel(%arg0: i32, %arg1: memref<16x32xf32, #tpu.memory_space<vmem>>, %arg2: memref<32x128xbf16, #tpu.memory_space<vmem>>, %arg3: memref<1x128xf32, #tpu.memory_space<vmem>>, %arg4: memref<128x211xbf16, #tpu.memory_space<vmem>>, %arg5: memref<1x211xf32, #tpu.memory_space<vmem>>, %arg6: memref<16x211xf32, #tpu.memory_space<vmem>>) attributes {dimension_semantics = [#tpu.dimension_semantics<parallel>], iteration_bounds = array<i64: 2>, scalar_prefetch = 0 : i64, scratch_operands = 0 : i64, tpu.core_type = #tpu.core_type<tc>, window_params = [{transform_indices = @transform_0, window_bounds = array<i64: 16, 32>}, {pipeline_mode = #tpu.pipeline_mode<synchronous>, transform_indices = @transform_1, window_bounds = array<i64: 32, 128>}, {pipeline_mode = #tpu.pipeline_mode<synchronous>, transform_indices = @transform_2, window_bounds = array<i64: 1, 128>}, {pipeline_mode = #tpu.pipeline_mode<synchronous>, transform_indices = @transform_3, window_bounds = array<i64: 128, 211>}, {pipeline_mode = #tpu.pipeline_mode<synchronous>, transform_indices = @transform_4, window_bounds = array<i64: 1, 211>}, {transform_indices = @transform_5, window_bounds = array<i64: 16, 211>}]} {
    %c0 = arith.constant 0 : index
    %c0_0 = arith.constant 0 : index
    %0 = vector.load %arg1[%c0, %c0_0] : memref<16x32xf32, #tpu.memory_space<vmem>>, vector<16x32xf32>
    %1 = arith.truncf %0 : vector<16x32xf32> to vector<16x32xbf16>
    %c0_1 = arith.constant 0 : index
    %c0_2 = arith.constant 0 : index
    %2 = vector.load %arg2[%c0_1, %c0_2] : memref<32x128xbf16, #tpu.memory_space<vmem>>, vector<32x128xbf16>
    %cst = arith.constant dense<0.000000e+00> : vector<16x128xf32>
    %3 = tpu.matmul %1, %2, %cst {dimension_numbers = #tpu.dot_dimension_numbers<[1], [0], [0], [1], [0, 0, 1, 1], [], []>} : vector<16x32xbf16>, vector<32x128xbf16>, vector<16x128xf32> -> vector<16x128xf32>
    %c0_3 = arith.constant 0 : index
    %c0_4 = arith.constant 0 : index
    %4 = vector.load %arg3[%c0_3, %c0_4] : memref<1x128xf32, #tpu.memory_space<vmem>>, vector<1x128xf32>
    %5 = vector.broadcast %4 : vector<1x128xf32> to vector<16x128xf32>
    %6 = arith.addf %3, %5 : vector<16x128xf32>
    %7 = math.tanh %6 : vector<16x128xf32>
    %8 = arith.truncf %7 : vector<16x128xf32> to vector<16x128xbf16>
    %c0_5 = arith.constant 0 : index
    %c0_6 = arith.constant 0 : index
    %9 = vector.load %arg4[%c0_5, %c0_6] : memref<128x211xbf16, #tpu.memory_space<vmem>>, vector<128x211xbf16>
    %cst_7 = arith.constant dense<0.000000e+00> : vector<16x211xf32>
    %10 = tpu.matmul %8, %9, %cst_7 {dimension_numbers = #tpu.dot_dimension_numbers<[1], [0], [0], [1], [0, 0, 1, 1], [], []>} : vector<16x128xbf16>, vector<128x211xbf16>, vector<16x211xf32> -> vector<16x211xf32>
    %c0_8 = arith.constant 0 : index
    %c0_9 = arith.constant 0 : index
    %11 = vector.load %arg5[%c0_8, %c0_9] : memref<1x211xf32, #tpu.memory_space<vmem>>, vector<1x211xf32>
    %12 = vector.broadcast %11 : vector<1x211xf32> to vector<16x211xf32>
    %13 = arith.addf %10, %12 : vector<16x211xf32>
    %c0_10 = arith.constant 0 : index
    %c0_11 = arith.constant 0 : index
    %14 = vector.load %arg6[%c0_10, %c0_11] : memref<16x211xf32, #tpu.memory_space<vmem>>, vector<16x211xf32>
    tpu.vector_store %arg6[%c0_10, %c0_11], %13 {strides = array<i32>} : memref<16x211xf32, #tpu.memory_space<vmem>>, vector<16x211xf32>,
    return
  }
  func.func @transform_0(%arg0: i32) -> (i32, i32) {
    %c0_i32 = arith.constant 0 : i32
    %c0_i32_0 = arith.constant 0 : i32
    return %arg0, %c0_i32 : i32, i32
  }
  func.func @transform_1(%arg0: i32) -> (i32, i32) {
    %c0_i32 = arith.constant 0 : i32
    %c0_i32_0 = arith.constant 0 : i32
    %c0_i32_1 = arith.constant 0 : i32
    return %c0_i32, %c0_i32_0 : i32, i32
  }
  func.func @transform_2(%arg0: i32) -> (i32, i32) {
    %c0_i32 = arith.constant 0 : i32
    %c0_i32_0 = arith.constant 0 : i32
    %c0_i32_1 = arith.constant 0 : i32
    return %c0_i32, %c0_i32_0 : i32, i32
  }
  func.func @transform_3(%arg0: i32) -> (i32, i32) {
    %c0_i32 = arith.constant 0 : i32
    %c0_i32_0 = arith.constant 0 : i32
    %c0_i32_1 = arith.constant 0 : i32
    return %c0_i32, %c0_i32_0 : i32, i32
  }
  func.func @transform_4(%arg0: i32) -> (i32, i32) {
    %c0_i32 = arith.constant 0 : i32
    %c0_i32_0 = arith.constant 0 : i32
    %c0_i32_1 = arith.constant 0 : i32
    return %c0_i32, %c0_i32_0 : i32, i32
  }
  func.func @transform_5(%arg0: i32) -> (i32, i32) {
    %c0_i32 = arith.constant 0 : i32
    %c0_i32_0 = arith.constant 0 : i32
    return %arg0, %c0_i32 : i32, i32
  }
}

</mosaic_0001>

<llo_original>
// kernel: network_forward.1
$region0: #{network_forward.1}
  #allocation0 [shape = 'u32[]', space=smem, size = 0x4, offset = 0x4, fixed_abs, tag = 'smem constant byte address 0x4 - core index']
  #allocation1 [shape = 'u32[144,128]{1,0:T(1,128)}', space=vmem, size = 0x12000, scoped, tag = 'internal scratch']
  %s0 = inlined_call_operand.vmem [shape: f32[24,32], index: 0, kind: input, shape index: {}]
  %s1 = inlined_call_operand.vmem [shape: bf16[32,128], index: 1, kind: input, shape index: {}]
  %s2 = inlined_call_operand.vmem [shape: f32[1,128], index: 2, kind: input, shape index: {}]
  %s3 = inlined_call_operand.vmem [shape: bf16[128,211], index: 3, kind: input, shape index: {}]
  %s4 = inlined_call_operand.vmem [shape: f32[1,211], index: 4, kind: input, shape index: {}]
  %s5 = inlined_call_operand.hbm [shape: f32[24,211], index: 5, kind: output, shape index: {}]
  %s6 = sld [smem:[#allocation0]]
  $region53: #{network_forward.1} parent=0
    _
  %s8 = ssub.s32 1, %s6
  %s9 = scalar_select 0, %s8, %s6
  $region1: #{network_forward.1} parent=0
    #allocation2 [shape = 'u8[32768]{0}', space=vmem, size = 0x8000, scoped, tag = 'output window, operand 0']
    #allocation3 [shape = 's32[2]{0}', space=sflag, size = 0x8, scoped, tag = 'scoped memory for network_forward.1']
    %10 = vsyncpa [#allocation3], 0
    %s11 = scalar_lea.sflag [#allocation3], 1
    %12 = vsyncpa %s11, 0
    loop: start=0, step=1, limit=4
    $region2: #{network_forward.1} parent=1 // loop_pre_header
      _
    $region3: #{network_forward.1} parent=1 // loop_header
      %s14 = sphi 0, %s18
      %p15 = scmp.ge.s32.totalorder %s14, 4
      %s24 = sphi 0, %s26
      %s27 = sphi 0, %s24
      %s28 = sphi 0, %s27
      %s44 = sphi 0, %s28
      %s48 = sphi 0, %s48
      %s50 = sphi 0, %s48
      %s51 = sphi 0, %s50
      %s65 = sphi 0, %s51
      %s69 = sphi 0, %s69
      %s71 = sphi 0, %s69
      %s72 = sphi 0, %s71
      %s86 = sphi 0, %s72
      %s90 = sphi 0, %s90
      %s92 = sphi 0, %s90
      %s93 = sphi 0, %s92
      %s107 = sphi 0, %s93
      %s111 = sphi 0, %s111
      %s113 = sphi 0, %s111
      %s114 = sphi 0, %s113
      %s128 = sphi 0, %s114
      %s134 = sphi 0, %s136
      %s137 = sphi 0, %s134
      %s138 = sphi 0, %s137
      %s154 = sphi 0, %s138
    $region4: #{network_forward.1} parent=1 // loop_header_branch
      %17 = sbr.rel (%p15) target = $region8
    $region5: #{network_forward.1} parent=1 // loop_body
      %s19 = ssub.s32 %s14, 1
      %s20 = ssub.s32 %s14, 2
      %s21 = sadd.s32 %s14, 1
      %s22 = ssub.s32 %s14, %s21
      %p23 = scmp.eq.s32.totalorder %s22, 0
      %s25 = sadd.s32 %s24, 1
      %s26 = scalar_select %p23, %s24, %s25
      %p29 = pneg %p23
      %p30 = scmp.eq.s32.totalorder %s14, 1
      %p31 = por %p29, %p30
      %p32 = scmp.ne.s32.totalorder %s24, %s27
      %p33 = scmp.eq.s32.totalorder %s14, 0
      %p34 = por %p32, %p33
      %p35 = scmp.ne.s32.totalorder %s24, %s27
      %p36 = scmp.eq.s32.totalorder %s19, 1
      %p37 = por %p35, %p36
      %p38 = scmp.ne.s32.totalorder %s27, %s28
      %p39 = scmp.eq.s32.totalorder %s19, 0
      %p40 = por %p38, %p39
      %p41 = scmp.ne.s32.totalorder %s27, %s28
      %p42 = scmp.eq.s32.totalorder %s20, 1
      %p43 = por %p41, %p42
      %p45 = scmp.ne.s32.totalorder %s28, %s44
      %p46 = scmp.eq.s32.totalorder %s20, 0
      %p47 = por %p45, %p46
      %s49 = sadd.s32 %s48, 1
      %p52 = scmp.eq.s32.totalorder %s14, 1
      %p53 = scmp.ne.s32.totalorder %s48, %s50
      %p54 = scmp.eq.s32.totalorder %s14, 0
      %p55 = por %p53, %p54
      %p56 = scmp.ne.s32.totalorder %s48, %s50
      %p57 = scmp.eq.s32.totalorder %s19, 1
      %p58 = por %p56, %p57
      %p59 = scmp.ne.s32.totalorder %s50, %s51
      %p60 = scmp.eq.s32.totalorder %s19, 0
      %p61 = por %p59, %p60
      %p62 = scmp.ne.s32.totalorder %s50, %s51
      %p63 = scmp.eq.s32.totalorder %s20, 1
      %p64 = por %p62, %p63
      %p66 = scmp.ne.s32.totalorder %s51, %s65
      %p67 = scmp.eq.s32.totalorder %s20, 0
      %p68 = por %p66, %p67
      %s70 = sadd.s32 %s69, 1
      %p73 = scmp.eq.s32.totalorder %s14, 1
      %p74 = scmp.ne.s32.totalorder %s69, %s71
      %p75 = scmp.eq.s32.totalorder %s14, 0
      %p76 = por %p74, %p75
      %p77 = scmp.ne.s32.totalorder %s69, %s71
      %p78 = scmp.eq.s32.totalorder %s19, 1
      %p79 = por %p77, %p78
      %p80 = scmp.ne.s32.totalorder %s71, %s72
      %p81 = scmp.eq.s32.totalorder %s19, 0
      %p82 = por %p80, %p81
      %p83 = scmp.ne.s32.totalorder %s71, %s72
      %p84 = scmp.eq.s32.totalorder %s20, 1
      %p85 = por %p83, %p84
      %p87 = scmp.ne.s32.totalorder %s72, %s86
      %p88 = scmp.eq.s32.totalorder %s20, 0
      %p89 = por %p87, %p88
      %s91 = sadd.s32 %s90, 1
      %p94 = scmp.eq.s32.totalorder %s14, 1
      %p95 = scmp.ne.s32.totalorder %s90, %s92
      %p96 = scmp.eq.s32.totalorder %s14, 0
      %p97 = por %p95, %p96
      %p98 = scmp.ne.s32.totalorder %s90, %s92
      %p99 = scmp.eq.s32.totalorder %s19, 1
      %p100 = por %p98, %p99
      %p101 = scmp.ne.s32.totalorder %s92, %s93
      %p102 = scmp.eq.s32.totalorder %s19, 0
      %p103 = por %p101, %p102
      %p104 = scmp.ne.s32.totalorder %s92, %s93
      %p105 = scmp.eq.s32.totalorder %s20, 1
      %p106 = por %p104, %p105
      %p108 = scmp.ne.s32.totalorder %s93, %s107
      %p109 = scmp.eq.s32.totalorder %s20, 0
      %p110 = por %p108, %p109
      %s112 = sadd.s32 %s111, 1
      %p115 = scmp.eq.s32.totalorder %s14, 1
      %p116 = scmp.ne.s32.totalorder %s111, %s113
      %p117 = scmp.eq.s32.totalorder %s14, 0
      %p118 = por %p116, %p117
      %p119 = scmp.ne.s32.totalorder %s111, %s113
      %p120 = scmp.eq.s32.totalorder %s19, 1
      %p121 = por %p119, %p120
      %p122 = scmp.ne.s32.totalorder %s113, %s114
      %p123 = scmp.eq.s32.totalorder %s19, 0
      %p124 = por %p122, %p123
      %p125 = scmp.ne.s32.totalorder %s113, %s114
      %p126 = scmp.eq.s32.totalorder %s20, 1
      %p127 = por %p125, %p126
      %p129 = scmp.ne.s32.totalorder %s114, %s128
      %p130 = scmp.eq.s32.totalorder %s20, 0
      %p131 = por %p129, %p130
      %s132 = ssub.s32 %s14, %s21
      %p133 = scmp.eq.s32.totalorder %s132, 0
      %s135 = sadd.s32 %s134, 1
      %s136 = scalar_select %p133, %s134, %s135
      %p139 = pneg %p133
      %p140 = scmp.eq.s32.totalorder %s14, 1
      %p141 = por %p139, %p140
      %p142 = scmp.ne.s32.totalorder %s134, %s137
      %p143 = scmp.eq.s32.totalorder %s14, 0
      %p144 = por %p142, %p143
      %p145 = scmp.ne.s32.totalorder %s134, %s137
      %p146 = scmp.eq.s32.totalorder %s19, 1
      %p147 = por %p145, %p146
      %p148 = scmp.ne.s32.totalorder %s137, %s138
      %p149 = scmp.eq.s32.totalorder %s19, 0
      %p150 = por %p148, %p149
      %p151 = scmp.ne.s32.totalorder %s137, %s138
      %p152 = scmp.eq.s32.totalorder %s20, 1
      %p153 = por %p151, %p152
      %p155 = scmp.ne.s32.totalorder %s138, %s154
      %p156 = scmp.eq.s32.totalorder %s20, 0
      %p157 = por %p155, %p156
      %p158 = scmp.le.s32.totalorder 1, %s14
      %p159 = scmp.lt.s32.totalorder %s14, 3
      %p160 = pnand %p158, %p159
      %p161 = pneg %p160
      // Predicated region
      $region9: #{network_forward.1} parent=5 // pred_check
        _
      $region10: #{network_forward.1} parent=5 // pred_check_branch
        %163 = sbr.rel (%p160) target = $region12
      $region11: #{network_forward.1} parent=5 // pred_region
        %s164 = ssub.s32 %s14, 1
        // Predicated region
        $region13: #{network_forward.1} parent=11 // pred_check
          %p165 = pneg %p61
        $region14: #{network_forward.1} parent=11 // pred_check_branch
          %167 = sbr.rel (%p165) target = $region16
        $region15: #{network_forward.1} parent=11 // pred_region
          _
        $region16: #{network_forward.1} parent=11 // pred_fallthru
          _
        // Predicated region
        $region17: #{network_forward.1} parent=11 // pred_check
          %p168 = pneg %p82
        $region18: #{network_forward.1} parent=11 // pred_check_branch
          %170 = sbr.rel (%p168) target = $region20
        $region19: #{network_forward.1} parent=11 // pred_region
          _
        $region20: #{network_forward.1} parent=11 // pred_fallthru
          _
        // Predicated region
        $region21: #{network_forward.1} parent=11 // pred_check
          %p171 = pneg %p103
        $region22: #{network_forward.1} parent=11 // pred_check_branch
          %173 = sbr.rel (%p171) target = $region24
        $region23: #{network_forward.1} parent=11 // pred_region
          _
        $region24: #{network_forward.1} parent=11 // pred_fallthru
          _
        // Predicated region
        $region25: #{network_forward.1} parent=11 // pred_check
          %p174 = pneg %p124
        $region26: #{network_forward.1} parent=11 // pred_check_branch
          %176 = sbr.rel (%p174) target = $region28
        $region27: #{network_forward.1} parent=11 // pred_region
          _
        $region28: #{network_forward.1} parent=11 // pred_fallthru
          _
      $region12: #{network_forward.1} parent=5 // pred_fallthru
        _
      %p177 = scmp.lt.s32.totalorder %s14, 2
      // Predicated region
      $region29: #{network_forward.1} parent=5 // pred_check
        %p178 = pneg %p177
      $region30: #{network_forward.1} parent=5 // pred_check_branch
        %180 = sbr.rel (%p178) target = $region32
      $region31: #{network_forward.1} parent=5 // pred_region
        // Predicated region
        $region33: #{network_forward.1} parent=31 // pred_check
          %p181 = pneg %p34
        $region34: #{network_forward.1} parent=31 // pred_check_branch
          %183 = sbr.rel (%p181) target = $region36
        $region35: #{network_forward.1} parent=31 // pred_region
          %s184 = smul.u32 2, %s14
          %s185 = ssub.s32 3, %s184
          %p186 = scmp.lt.s32.totalorder %s185, 2
          %s187 = scalar_select %p186, %s185, 2
          %s188 = smul.u32 128, %s187
          %p189 = scmp.lt.s32.totalorder %s184, 2
          %s190 = scalar_select %p189, %s184, 2
          %s191 = smul.addr %s190, 8
          %s192 = scalar_lea.vmem %s0, %s191
          %s193 = smul.u32 2, %s14
          %s194 = ssub.s32 3, %s193
          %p195 = scmp.lt.s32.totalorder %s194, 2
          %s196 = scalar_select %p195, %s194, 2
          %s197 = smul.u32 128, %s196
        $region36: #{network_forward.1} parent=31 // pred_fallthru
          _
      $region32: #{network_forward.1} parent=5 // pred_fallthru
        _
      %p198 = scmp.le.s32.totalorder 1, %s14
      %p199 = scmp.lt.s32.totalorder %s14, 3
      %p200 = pnand %p198, %p199
      %p201 = pneg %p200
      // Predicated region
      $region37: #{network_forward.1} parent=5 // pred_check
        _
      $region38: #{network_forward.1} parent=5 // pred_check_branch
        %203 = sbr.rel (%p200) target = $region40
      $region39: #{network_forward.1} parent=5 // pred_region
        %s204 = ssub.s32 %s14, 1
        %s205 = smul.u32 2, %s19
        %s206 = ssub.s32 3, %s205
        %p207 = scmp.lt.s32.totalorder %s206, 2
        %s208 = scalar_select %p207, %s206, 2
        %s209 = smul.u32 128, %s208
        %p210 = scmp.lt.s32.totalorder %s205, 2
        %s211 = scalar_select %p210, %s205, 2
        %s212 = smul.addr %s211, 8
        %s213 = scalar_lea.vmem %s0, %s212
        %p214 = pneg %p40
        %p215 = pneg %p37
        %p216 = pneg %p61
        %p217 = pneg %p58
        %p218 = pneg %p82
        %p219 = pneg %p79
        %p220 = pneg %p103
        %p221 = pneg %p100
        %p222 = pneg %p124
        %p223 = pneg %p121
        %p224 = pneg %p150
        %p225 = pneg %p147
        %s226 = sand.u32 %s137, 1
        %s227 = scalar_lea.sflag [#allocation3], %s226
        %s228 = sand.u32 %s137, 1
        %s229 = smul.addr %s228, 32
        %s230 = scalar_lea.vmem [#allocation2], %s229
        %s231 = smul.u32 2, %s19
        %s232 = ssub.s32 3, %s231
        %p233 = scmp.lt.s32.totalorder %s232, 2
        %s234 = scalar_select %p233, %s232, 2
        %s235 = smul.u32 128, %s234
        %p236 = scmp.lt.s32.totalorder %s231, 2
        %s237 = scalar_select %p236, %s231, 2
        %s238 = smul.addr %s237, 8
        %s239 = scalar_lea.vmem %s0, %s238
        %s240 = smul.u32 2, %s19
        %s241 = ssub.s32 3, %s240
        %p242 = scmp.lt.s32.totalorder %s241, 2
        %s243 = scalar_select %p242, %s241, 2
        %s244 = smul.u32 128, %s243
        %s245 = smul.u32 2, %s19
        %s246 = ssub.s32 3, %s245
        %p247 = scmp.lt.s32.totalorder %s246, 2
        %s248 = scalar_select %p247, %s246, 2
        %s249 = smul.u32 128, %s248
        %s250 = smul.u32 %s249, 2
        %v252 = vld [vmem:[%s239] sm:$0xff]
        %v253 = vld [vmem:[%s239 + $0x8] sm:$0xff]
        %v254 = vpack.c.bf16 %v253, %v252
        %v255 = vld [vmem:[%s1] sm:$0xf]
        %v256 = vld [vmem:[%s1 + $0x4] sm:$0xf]
        %v257 = vld [vmem:[%s1 + $0x8] sm:$0xf]
        %v258 = vld [vmem:[%s1 + $0xc] sm:$0xf]
        %v259 = vld [vmem:[%s2] sm:$0x1]
        %v261 = vlaneseq
        %v262 = vshrl.u32 %v261, 7
        %v263 = vsub.s32 0, %v262
        %v264 = vrot.slane %v259, %v263
        %v270 = vunpack.c.l.b16 %v255
        %v271 = vunpack.c.l.b16 %v256
        %v272 = vunpack.c.l.b16 %v257
        %v273 = vunpack.c.l.b16 %v258
        %v274 = vpack.c.b16 %v271, %v270
        %v275 = vpack.c.b16 %v273, %v272
        %vm278 = vcmask 261120
        %v280 = vsel %vm278, %v254, 0
        %282 = vmatprep.subr.bf16.mxu0 0
        %283 = vmatpush1.bf16.msra.mxu0 0
        %284 = vmatprep.subr.bf16.mxu0 0
        %285 = vmatpush1.bf16.msra.mxu0 0
        %286 = vmatprep.subr.bf16.mxu0 0
        %287 = vmatpush1.bf16.msra.mxu0 0
        %288 = vmatprep.subr.bf16.mxu0 0
        %289 = vmatpush1.bf16.msra.mxu0 0
        %290 = vmatprep.subr.bf16.mxu0 0
        %291 = vmatpush1.bf16.msra.mxu0 0
        %292 = vmatprep.subr.bf16.mxu0 0
        %293 = vmatpush1.bf16.msra.mxu0 0
        %294 = vmatprep.subr.bf16.mxu0 0
        %295 = vmatpush1.bf16.msra.mxu0 %v275
        %296 = vmatprep.subr.bf16.mxu0 0
        %297 = vmatpush1.bf16.msra.mxu0 %v274
        %298 = vmatprep.subr.bf16.mxu0 0
        %299 = vmatpush2.bf16.msra.mxu0 0
        %300 = vmatprep.subr.bf16.mxu0 0
        %301 = vmatpush2.bf16.msra.mxu0 0
        %302 = vmatprep.subr.bf16.mxu0 0
        %303 = vmatpush2.bf16.msra.mxu0 0
        %304 = vmatprep.subr.bf16.mxu0 0
        %305 = vmatpush2.bf16.msra.mxu0 0
        %306 = vmatprep.subr.bf16.mxu0 0
        %307 = vmatpush2.bf16.msra.mxu0 0
        %308 = vmatprep.subr.bf16.mxu0 0
        %309 = vmatpush2.bf16.msra.mxu0 0
        %310 = vmatprep.subr.bf16.mxu0 0
        %311 = vmatpush2.bf16.msra.mxu0 0
        %312 = vmatprep.subr.bf16.mxu0 0
        %313 = vmatpush2.bf16.msra.mxu0 0
        %314 = vmatprep.mubr.bf16.mxu0 0
        %315 = vmatmul.mubr.bf16.gmra.mxu0 %v280
        %v316 = vpop.f32.mrf.mxu0
        %v317 = vadd.f32 %v264, %v316
        %v318 = vpop.f32.mrf.mxu0
        %v319 = vpop.f32.mrf.mxu0
        %v320 = vadd.f32 %v264, %v319
        %v321 = vpop.f32.mrf.mxu0
        %322 = vdwg.mxu0
        %v323 = vtanh.pop %v317
        %v324 = vtanh.pop %v320
        %v325 = vpack.c.bf16 %v324, %v323
        %v326 = vld [vmem:[%s3] sm:$0xff]
        %v327 = vld [vmem:[%s3 + $0x8] sm:$0xff]
        %v328 = vld [vmem:[%s3 + $0x10] sm:$0xff]
        %v329 = vld [vmem:[%s3 + $0x18] sm:$0xff]
        %v330 = vld [vmem:[%s3 + $0x20] sm:$0xff]
        %v331 = vld [vmem:[%s3 + $0x28] sm:$0xff]
        %v332 = vld [vmem:[%s3 + $0x30] sm:$0xff]
        %v333 = vld [vmem:[%s3 + $0x38] sm:$0xff]
        %v334 = vld [vmem:[%s3 + $0x40] sm:$0xff]
        %v335 = vld [vmem:[%s3 + $0x48] sm:$0xff]
        %v336 = vld [vmem:[%s3 + $0x50] sm:$0xff]
        %v337 = vld [vmem:[%s3 + $0x58] sm:$0xff]
        %v338 = vld [vmem:[%s3 + $0x60] sm:$0xff]
        %v339 = vld [vmem:[%s3 + $0x68] sm:$0xff]
        %v340 = vld [vmem:[%s3 + $0x70] sm:$0xff]
        %v341 = vld [vmem:[%s3 + $0x78] sm:$0xff]
        %v342 = vld [vmem:[%s4] sm:$0x3]
        %v344 = vlaneseq
        %v345 = vshrl.u32 %v344, 7
        %v346 = vsub.s32 0, %v345
        %v347 = vrot.slane %v342, %v346
        %v348 = vlaneseq
        %v349 = vshrl.u32 %v348, 7
        %v350 = vsub.s32 1, %v349
        %v351 = vrot.slane %v342, %v350
        %v370 = vunpack.c.l.b16 %v326
        %v371 = vunpack.c.h.b16 %v326
        %v372 = vunpack.c.l.b16 %v327
        %v373 = vunpack.c.h.b16 %v327
        %v374 = vunpack.c.l.b16 %v328
        %v375 = vunpack.c.h.b16 %v328
        %v376 = vunpack.c.l.b16 %v329
        %v377 = vunpack.c.h.b16 %v329
        %v378 = vunpack.c.l.b16 %v330
        %v379 = vunpack.c.h.b16 %v330
        %v380 = vunpack.c.l.b16 %v331
        %v381 = vunpack.c.h.b16 %v331
        %v382 = vunpack.c.l.b16 %v332
        %v383 = vunpack.c.h.b16 %v332
        %v384 = vunpack.c.l.b16 %v333
        %v385 = vunpack.c.h.b16 %v333
        %v386 = vunpack.c.l.b16 %v334
        %v387 = vunpack.c.h.b16 %v334
        %v388 = vunpack.c.l.b16 %v335
        %v389 = vunpack.c.h.b16 %v335
        %v390 = vunpack.c.l.b16 %v336
        %v391 = vunpack.c.h.b16 %v336
        %v392 = vunpack.c.l.b16 %v337
        %v393 = vunpack.c.h.b16 %v337
        %v394 = vunpack.c.l.b16 %v338
        %v395 = vunpack.c.h.b16 %v338
        %v396 = vunpack.c.l.b16 %v339
        %v397 = vunpack.c.h.b16 %v339
        %v398 = vunpack.c.l.b16 %v340
        %v399 = vunpack.c.h.b16 %v340
        %v400 = vunpack.c.l.b16 %v341
        %v401 = vunpack.c.h.b16 %v341
        %v402 = vpack.c.b16 %v372, %v370
        %v403 = vpack.c.b16 %v373, %v371
        %v404 = vpack.c.b16 %v376, %v374
        %v405 = vpack.c.b16 %v377, %v375
        %v406 = vpack.c.b16 %v380, %v378
        %v407 = vpack.c.b16 %v381, %v379
        %v408 = vpack.c.b16 %v384, %v382
        %v409 = vpack.c.b16 %v385, %v383
        %v410 = vpack.c.b16 %v388, %v386
        %v411 = vpack.c.b16 %v389, %v387
        %v412 = vpack.c.b16 %v392, %v390
        %v413 = vpack.c.b16 %v393, %v391
        %v414 = vpack.c.b16 %v396, %v394
        %v415 = vpack.c.b16 %v397, %v395
        %v416 = vpack.c.b16 %v400, %v398
        %v417 = vpack.c.b16 %v401, %v399
        %434 = vmatprep.subr.bf16.mxu0 %v417
        %435 = vmatpush1.bf16.msra.mxu0 %v416
        %436 = vmatprep.subr.bf16.mxu0 %v415
        %437 = vmatpush1.bf16.msra.mxu0 %v414
        %438 = vmatprep.subr.bf16.mxu0 %v413
        %439 = vmatpush1.bf16.msra.mxu0 %v412
        %440 = vmatprep.subr.bf16.mxu0 %v411
        %441 = vmatpush1.bf16.msra.mxu0 %v410
        %442 = vmatprep.subr.bf16.mxu0 %v409
        %443 = vmatpush1.bf16.msra.mxu0 %v408
        %444 = vmatprep.subr.bf16.mxu0 %v407
        %445 = vmatpush1.bf16.msra.mxu0 %v406
        %446 = vmatprep.subr.bf16.mxu0 %v405
        %447 = vmatpush1.bf16.msra.mxu0 %v404
        %448 = vmatprep.subr.bf16.mxu0 %v403
        %449 = vmatpush1.bf16.msra.mxu0 %v402
        %450 = vmatprep.subr.bf16.mxu0 0
        %451 = vmatpush2.bf16.msra.mxu0 0
        %452 = vmatprep.subr.bf16.mxu0 0
        %453 = vmatpush2.bf16.msra.mxu0 0
        %454 = vmatprep.subr.bf16.mxu0 0
        %455 = vmatpush2.bf16.msra.mxu0 0
        %456 = vmatprep.subr.bf16.mxu0 0
        %457 = vmatpush2.bf16.msra.mxu0 0
        %458 = vmatprep.subr.bf16.mxu0 0
        %459 = vmatpush2.bf16.msra.mxu0 0
        %460 = vmatprep.subr.bf16.mxu0 0
        %461 = vmatpush2.bf16.msra.mxu0 0
        %462 = vmatprep.subr.bf16.mxu0 0
        %463 = vmatpush2.bf16.msra.mxu0 0
        %464 = vmatprep.subr.bf16.mxu0 0
        %465 = vmatpush2.bf16.msra.mxu0 0
        %466 = vmatprep.mubr.bf16.mxu0 0
        %467 = vmatmul.mubr.bf16.gmra.mxu0 %v325
        %v468 = vpop.f32.mrf.mxu0
        %v469 = vadd.f32 %v347, %v468
        %v470 = vpop.f32.mrf.mxu0
        %v471 = vadd.f32 %v351, %v470
        %v472 = vpop.f32.mrf.mxu0
        %v473 = vadd.f32 %v347, %v472
        %v474 = vpop.f32.mrf.mxu0
        %v475 = vadd.f32 %v351, %v474
        %476 = vdwg.mxu0
        %477 = vst [vmem:[%s230] sm:$0xff] %v469
        %vm478 = vcmask 678912
        %479 = vst.msk [vmem:[%s230 + $0x8] sm:$0xff] %vm478, %v471
        %480 = vst [vmem:[%s230 + $0x10] sm:$0xff] %v473
        %481 = vst.msk [vmem:[%s230 + $0x18] sm:$0xff] %vm478, %v475
        %s482 = sand.u32 %s137, 1
        %s483 = scalar_lea.sflag [#allocation3], %s482
        %s484 = sand.u32 %s137, 1
        %s485 = smul.addr %s484, 32
        %s486 = scalar_lea.vmem [#allocation2], %s485
        // Predicated region
        $region41: #{network_forward.1} parent=39 // pred_check
          %p487 = pneg %p147
        $region42: #{network_forward.1} parent=39 // pred_check_branch
          %489 = sbr.rel (%p487) target = $region44
        $region43: #{network_forward.1} parent=39 // pred_region
          %s490 = smul.u32 2, %s19
          %s491 = ssub.s32 3, %s490
          %p492 = scmp.lt.s32.totalorder %s491, 2
          %s493 = scalar_select %p492, %s491, 2
          %s494 = smul.u32 128, %s493
          %s495 = smul.u32 %s494, 2
          %s497 = ssub.s32 512, %s495
          %498 = vsyncadd %s483, %s497
          %p499 = scmp.ne.s32.totalorder 0, %s495
          %s500 = smul.addr %s490, 2
          %s501 = smul.addr %s500, 128
          %s502 = scalar_lea.hbm %s5, %s501
          %s503 = smul.u32 16, %s493
          %s504 = sshll.u32 %s486, 4
          %s505 = int_to_ptr.vmem [resolvable:$true] %s504
          %s506 = sshll.u32 %s503, 4
          %510 = dma.vmem_to_hbm [thread:$0]  (%p499), %s505, %s506, %s502, %s483, 256, 256, 16
        $region44: #{network_forward.1} parent=39 // pred_fallthru
          _
      $region40: #{network_forward.1} parent=5 // pred_fallthru
        _
      %p511 = scmp.le.s32.totalorder 2, %s14
      // Predicated region
      $region45: #{network_forward.1} parent=5 // pred_check
        %p512 = pneg %p511
      $region46: #{network_forward.1} parent=5 // pred_check_branch
        %514 = sbr.rel (%p512) target = $region48
      $region47: #{network_forward.1} parent=5 // pred_region
        %s515 = ssub.s32 %s14, 2
        // Predicated region
        $region49: #{network_forward.1} parent=47 // pred_check
          %p516 = pneg %p153
        $region50: #{network_forward.1} parent=47 // pred_check_branch
          %518 = sbr.rel (%p516) target = $region52
        $region51: #{network_forward.1} parent=47 // pred_region
          %s519 = sand.u32 %s138, 1
          %s520 = scalar_lea.sflag [#allocation3], %s519
          %s521 = sand.u32 %s138, 1
          %s522 = smul.addr %s521, 32
          %s523 = scalar_lea.vmem [#allocation2], %s522
          %524 = dma.done %s520, 512
        $region52: #{network_forward.1} parent=47 // pred_fallthru
          _
      $region48: #{network_forward.1} parent=5 // pred_fallthru
        _
    $region6: #{network_forward.1} parent=1 // loop_footer
      %s18 = sadd.s32 1, %s14
    $region7: #{network_forward.1} parent=1 // loop_footer_branch
      %13 = sbr.rel target = $region3
    $region8: #{network_forward.1} parent=1 // loop_exit
      _
    %525 = vsyncpa [#allocation3], 1
    %s526 = scalar_lea.sflag [#allocation3], 1
    %527 = vsyncpa %s526, 1

</llo_original>
